<compile_context>
chip_gen: v5e
topology: v5e:2x2
jax: 0.10.0
libtpu: 0.0.40
codegen_flags: <defaults>
</compile_context>

<pallas_src>
import jax
import jax.numpy as jnp
from jax.experimental import pallas as pl
from jax.experimental.pallas import tpu as pltpu

_BN_EPS = 1e-5


# ----------------------------------------------------------------------------
# Weight transform: 3x3 conv (stride 1, pad 1) as a K-stacked banded matmul.
#
# In the lane-flattened layout (rows = image rows, cols = W*Cin) the conv
# output row i is   out[i] = sum_dy  x_padH[i + dy] @ M[dy]
# where M[dy] is a (W*Cin, W*Cout) band matrix carrying w[dy, dx, :, :] on the
# (input column j+dx-pad) x (output column j) block diagonal.  The W boundary
# (zero padding in W) is folded into M by cropping the bands; only the H halo
# is realised at runtime (as zero rows inside a VMEM scratch).  The ks bands
# are then stacked along K so the kernel runs ONE matmul with K = ks*W*Cin.
# ----------------------------------------------------------------------------
def build_banded_weights(w, W):
    ks, _, cin, cout = w.shape          # HWIO
    pad = (ks - 1) // 2
    m = jnp.zeros((ks, W, cin, W, cout), w.dtype)
    for j in range(W):
        lo = max(0, j - pad)
        hi = min(W, j + pad + 1)
        m = m.at[:, lo:hi, :, j, :].set(w[:, lo - j + pad:hi - j + pad])
    return m.reshape(ks, W * cin, W * cout)


def _choose_images_per_step(n_images, H, target_rows=256):
    """Images per grid step: push the matmul M-dim (= nb*H) toward the MXU
    depth (128 on v5e, 256 on v6e/v7x) while keeping >= 2 grid steps whenever
    there are >= 2 images, so both v7x TensorCores stay busy."""
    best = 1
    for nb in range(1, n_images + 1):
        if n_images % nb:
            continue
        steps = n_images // nb
        if nb * H <= target_rows and (steps >= 2 or n_images == 1):
            best = nb
    return best


# ----------------------------------------------------------------------------
# Kernel: fused (optional previous-layer BN+ReLU) + 3x3 conv (no bias, one
#         K-stacked bf16 MXU matmul) + BatchNorm partial statistics.
#         One block of `nb` images per grid step.
# ----------------------------------------------------------------------------
def _make_conv_kernel(H, nb, ks, pad, wcin, apply_pre_act):
    def body(act, m_ref, o_ref, st_ref, xcat_ref):
        # act: (nb*H, wcin) f32, already pre-activated input rows of the block.
        # Scatter the ks row-shifted copies into the K-stacked scratch
        # (nb*H, ks*wcin).  The H halo is realised as zero rows written here
        # (never materialised in HBM); the W halo lives in the banded weights.
        # nb and ks are small static ints -> unrolled stores.
        for b in range(nb):                       # per-image halo boundaries
            r0 = b * H
            for dy in range(ks):
                s = dy - pad                      # row shift in [-pad, pad]
                c0 = dy * wcin
                lo = max(0, -s)
                hi = min(H, H - s)
                if lo > 0:
                    xcat_ref[r0:r0 + lo, c0:c0 + wcin] = (
                        jnp.zeros((lo, wcin), jnp.float32))
                if hi < H:
                    xcat_ref[r0 + hi:r0 + H, c0:c0 + wcin] = (
                        jnp.zeros((H - hi, wcin), jnp.float32))
                xcat_ref[r0 + lo:r0 + hi, c0:c0 + wcin] = (
                    act[r0 + lo + s:r0 + hi + s, :])

        # Single MXU matmul: M = nb*H, K = ks*wcin, N = wcout (lane-dense
        # output).  bf16 operands, f32 accumulation.
        acc = jnp.dot(xcat_ref[...].astype(jnp.bfloat16), m_ref[...],
                      preferred_element_type=jnp.float32)
        o_ref[...] = acc.astype(o_ref.dtype)

        # BN partial statistics for this block; the wrapper reduces the tiny
        # (G, 2, W*Cout) tensor.
        # TODO(synk): E[x^2]-mean^2 cancels catastrophically at very large
        #             N*H*W; switch to a shifted/two-pass reduction at scale.
        st_ref[0, 0:1, :] = jnp.sum(acc, axis=0, keepdims=True)
        st_ref[0, 1:2, :] = jnp.sum(acc * acc, axis=0, keepdims=True)

    if apply_pre_act:
        def kernel(x_ref, m_ref, sc_ref, sh_ref, o_ref, st_ref, xcat_ref):
            # Previous layer's folded BN affine + ReLU, applied once in VMEM
            # on the raw conv output before this layer's matmul.
            act = jnp.maximum(
                x_ref[...].astype(jnp.float32) * sc_ref[...] + sh_ref[...], 0.0)
            body(act, m_ref, o_ref, st_ref, xcat_ref)
    else:
        def kernel(x_ref, m_ref, o_ref, st_ref, xcat_ref):
            body(x_ref[...].astype(jnp.float32), m_ref, o_ref, st_ref, xcat_ref)
    return kernel


def conv_bn_stats(x, m_flat, pre_scale=None, pre_shift=None, *, H,
                  images_per_step):
    """3x3 conv (no bias) on lane-flattened (N*H, W*Cin) input.

    Returns (raw conv output (N*H, W*Cout) f32, BN partial stats
    (G, 2, W*Cout) f32).  If pre_scale / pre_shift are given, the previous
    layer's folded BN + ReLU is applied to the input in VMEM first.
    """
    NH, wcin = x.shape
    kwcin, wcout = m_flat.shape
    ks = kwcin // wcin
    assert ks * wcin == kwcin
    pad = (ks - 1) // 2
    n_images = NH // H
    nb = images_per_step
    assert n_images % nb == 0
    G = n_images // nb
    rows = nb * H
    apply_pre_act = pre_scale is not None

    kernel = _make_conv_kernel(H, nb, ks, pad, wcin, apply_pre_act)

    in_specs = [
        pl.BlockSpec((rows, wcin), lambda i: (i, 0)),
        pl.BlockSpec((kwcin, wcout), lambda i: (0, 0)),
    ]
    args = [x, m_flat]
    if apply_pre_act:
        in_specs += [pl.BlockSpec((1, wcin), lambda i: (0, 0)),
                     pl.BlockSpec((1, wcin), lambda i: (0, 0))]
        args += [pre_scale, pre_shift]

    flops = 2 * G * rows * kwcin * wcout
    bytes_accessed = (4 * int(x.size) + 2 * int(m_flat.size)
                      + 4 * NH * wcout + 4 * G * 2 * wcout
                      + (8 * wcin if apply_pre_act else 0))

    # VMEM per step is tiny at these shapes; for large layers re-derive the
    # block sizes against v7x's 64 MiB (32 MiB scoped default) and set
    # vmem_limit_bytes explicitly.
    return pl.pallas_call(
        kernel,
        out_shape=(jax.ShapeDtypeStruct((NH, wcout), jnp.float32),
                   jax.ShapeDtypeStruct((G, 2, wcout), jnp.float32)),
        grid=(G,),
        in_specs=in_specs,
        out_specs=(pl.BlockSpec((rows, wcout), lambda i: (i, 0)),
                   pl.BlockSpec((1, 2, wcout), lambda i: (i, 0, 0))),
        scratch_shapes=[pltpu.VMEM((rows, kwcin), jnp.float32)],
        compiler_params=pltpu.CompilerParams(
            dimension_semantics=("parallel",)),
        cost_estimate=pl.CostEstimate(flops=flops, transcendentals=0,
                                      bytes_accessed=bytes_accessed),
    )(*args)


# ----------------------------------------------------------------------------
# Glue: fold the tiny BN statistics into a per-lane (W-tiled) affine.
# ----------------------------------------------------------------------------
def _fold_bn(stats, count, gamma, beta, W, eps):
    cout = gamma.shape[0]
    s = jnp.sum(stats, axis=0).reshape(2, W, cout).sum(axis=1)   # (2, Cout)
    mean = s[0] / count
    var = s[1] / count - mean * mean                # biased batch variance
    scale = gamma * jax.lax.rsqrt(var + eps)
    shift = beta - mean * scale
    # broadcast per-channel affine across W for the lane-flattened layout
    return (jnp.tile(scale, W).reshape(1, W * cout),
            jnp.tile(shift, W).reshape(1, W * cout))


# ----------------------------------------------------------------------------
# unetConv2 equivalent (deterministic, in-script parameter init)
# ----------------------------------------------------------------------------
def init_unet_conv2_params(key, in_size, out_size, n=2, ks=3):
    """Kaiming-normal conv weights (fan_in), BatchNorm weight ~ N(1, 0.02),
    bias = 0 (matches weights_init_kaiming)."""
    params = []
    cin = in_size
    for _ in range(n):
        key, kw, kb, kg = jax.random.split(key, 4)
        fan_in = cin * ks * ks
        std = (2.0 / fan_in) ** 0.5                  # kaiming_normal_, a=0
        w = std * jax.random.normal(kw, (ks, ks, cin, out_size), jnp.float32)
        # Conv bias exists in the PyTorch module but is mathematically
        # cancelled by training-mode BatchNorm's mean subtraction -> kept for
        # parameter parity, never fed to the kernel (the reference uses it).
        bound = 1.0 / (fan_in ** 0.5)
        b = jax.random.uniform(kb, (out_size,), jnp.float32, -bound, bound)
        gamma = 1.0 + 0.02 * jax.random.normal(kg, (out_size,), jnp.float32)
        beta = jnp.zeros((out_size,), jnp.float32)
        params.append(dict(w=w, b=b, gamma=gamma, beta=beta))
        cin = out_size
    return params


def prepare_params(params, W):
    """Pre-transform conv weights into the flattened banded bf16 form used by
    the kernel (K-stacked: rows indexed by dy*W*Cin + w*Cin + ci)."""
    prepared = []
    for p in params:
        m = build_banded_weights(p["w"], W)           # (ks, W*Cin, W*Cout) f32
        ks, wcin, wcout = m.shape
        prepared.append(dict(
            m=m.reshape(ks * wcin, wcout).astype(jnp.bfloat16),  # bf16 operand
            gamma=p["gamma"], beta=p["beta"]))
    return prepared


@jax.jit
def unet_conv2_forward(prepared, x_nchw):
    N, C, H, W = x_nchw.shape
    # NCHW -> lane-flattened (N*H, W*C): one XLA transpose at the module
    # boundary (interface kept NCHW for PyTorch parity); the leading-dim
    # reshape is free.  All kernels stay channels-minor / lane-dense.
    x2d = jnp.transpose(x_nchw, (0, 2, 3, 1)).reshape(N * H, W * C)

    nb = _choose_images_per_step(N, H)
    count = N * H * W

    h = x2d
    scale_t = shift_t = None
    for layer in prepared:
        # conv + (fused previous-layer BN/ReLU) + BN partial stats, one call.
        h, stats = conv_bn_stats(h, layer["m"], scale_t, shift_t,
                                 H=H, images_per_step=nb)
        scale_t, shift_t = _fold_bn(stats, count, layer["gamma"],
                                    layer["beta"], W, _BN_EPS)

    # Final folded BN affine + ReLU fused (by XLA) into the NHWC->NCHW output
    # transpose: one read + one write of the final activation instead of a
    # standalone bn_relu kernel pass plus a separate transpose pass.
    cout = prepared[-1]["gamma"].shape[0]
    y = jnp.maximum(h * scale_t + shift_t, 0.0)
    return jnp.transpose(y.reshape(N, H, W, cout), (0, 3, 1, 2))


# ----------------------------------------------------------------------------
# Pure-JAX reference.  Includes the conv bias (proves the kernel's bias-drop
# under training-mode BN is exact).  matmul_dtype=bfloat16 rounds the conv
# operands exactly like the kernel's bf16 MXU path (f32 accumulation).
# ----------------------------------------------------------------------------
def _reference_forward(params, x_nchw, eps=_BN_EPS, matmul_dtype=jnp.float32):
    x = x_nchw
    for p in params:
        y = jax.lax.conv_general_dilated(
            x.astype(matmul_dtype), p["w"].astype(matmul_dtype),
            window_strides=(1, 1), padding=((1, 1), (1, 1)),
            dimension_numbers=("NCHW", "HWIO", "NCHW"),
            preferred_element_type=jnp.float32)
        y = y + p["b"][None, :, None, None]
        mean = jnp.mean(y, axis=(0, 2, 3), keepdims=True)
        var = jnp.mean((y - mean) ** 2, axis=(0, 2, 3), keepdims=True)
        yhat = (y - mean) * jax.lax.rsqrt(var + eps)
        x = jnp.maximum(yhat * p["gamma"][None, :, None, None]
                        + p["beta"][None, :, None, None], 0.0)
    return x


if __name__ == "__main__":
    key = jax.random.PRNGKey(0)
    key, kx = jax.random.split(key)

    N, Cin, Cout, H, W = 2, 4, 8, 16, 16
    x = jax.random.normal(kx, (N, Cin, H, W), jnp.float32)   # NCHW, like PyTorch

    params = init_unet_conv2_params(key, in_size=Cin, out_size=Cout, n=2, ks=3)
    prepared = prepare_params(params, W)

    out = jax.block_until_ready(unet_conv2_forward(prepared, x))

    assert out.shape == (N, Cout, H, W)
    assert bool(jnp.all(out >= 0.0))                  # ReLU output non-negative
    assert bool(jnp.all(jnp.isfinite(out)))

    # Tight check vs. a reference with matching bf16 matmul-operand rounding
    # (proves banding / fusion / BN-folding / bias-drop are exact).
    ref_bf16 = _reference_forward(params, x, matmul_dtype=jnp.bfloat16)
    assert bool(jnp.allclose(out, ref_bf16, atol=2e-3, rtol=2e-3))

    # Looser check vs. the exact f32 PyTorch-semantics reference; the only
    # difference is bf16 rounding of the MXU matmul operands.
    ref_f32 = _reference_forward(params, x)
    err = jnp.abs(out - ref_f32)
    assert bool(jnp.max(err) < 5e-2)
    assert bool(jnp.mean(err) < 1e-2)

    print("KERNEL_OK")
</pallas_src>

<mosaic_0001>
module attributes {stable_mosaic.version = 11 : i64} {
  func.func @kernel(%arg0: i32, %arg1: memref<16x64xf32, #tpu.memory_space<vmem>>, %arg2: memref<192x128xbf16, #tpu.memory_space<vmem>>, %arg3: memref<16x128xf32, #tpu.memory_space<vmem>>, %arg4: memref<1x2x128xf32, #tpu.memory_space<vmem>>, %arg5: memref<16x192xf32, #tpu.memory_space<vmem>>) attributes {dimension_semantics = [#tpu.dimension_semantics<parallel>], iteration_bounds = array<i64: 2>, scalar_prefetch = 0 : i64, scratch_operands = 1 : i64, tpu.core_type = #tpu.core_type<tc>, window_params = [{transform_indices = @transform_0, window_bounds = array<i64: 16, 64>}, {pipeline_mode = #tpu.pipeline_mode<synchronous>, transform_indices = @transform_1, window_bounds = array<i64: 192, 128>}, {transform_indices = @transform_2, window_bounds = array<i64: 16, 128>}, {transform_indices = @transform_3, window_bounds = array<i64: 1, 2, 128>}]} {
    %c0 = arith.constant 0 : index
    %c0_0 = arith.constant 0 : index
    %0 = vector.load %arg1[%c0, %c0_0] : memref<16x64xf32, #tpu.memory_space<vmem>>, vector<16x64xf32>
    %cst = arith.constant 0.000000e+00 : f32
    %1 = vector.broadcast %cst : f32 to vector<1x64xf32>
    %c0_1 = arith.constant 0 : index
    %c0_2 = arith.constant 0 : index
    %2 = vector.load %arg5[%c0_1, %c0_2] : memref<16x192xf32, #tpu.memory_space<vmem>>, vector<1x64xf32>
    tpu.vector_store %arg5[%c0_1, %c0_2], %1 {strides = array<i32>} : memref<16x192xf32, #tpu.memory_space<vmem>>, vector<1x64xf32>,
    %3 = vector.extract_strided_slice %0 {offsets = [0, 0], sizes = [15, 64], strides = [1, 1]} : vector<16x64xf32> to vector<15x64xf32>
    %c1 = arith.constant 1 : index
    %c0_3 = arith.constant 0 : index
    %4 = vector.load %arg5[%c1, %c0_3] : memref<16x192xf32, #tpu.memory_space<vmem>>, vector<15x64xf32>
    tpu.vector_store %arg5[%c1, %c0_3], %3 {strides = array<i32>} : memref<16x192xf32, #tpu.memory_space<vmem>>, vector<15x64xf32>,
    %c0_4 = arith.constant 0 : index
    %c64 = arith.constant 64 : index
    %5 = vector.load %arg5[%c0_4, %c64] : memref<16x192xf32, #tpu.memory_space<vmem>>, vector<16x64xf32>
    tpu.vector_store %arg5[%c0_4, %c64], %0 {strides = array<i32>} : memref<16x192xf32, #tpu.memory_space<vmem>>, vector<16x64xf32>,
    %cst_5 = arith.constant 0.000000e+00 : f32
    %6 = vector.broadcast %cst_5 : f32 to vector<1x64xf32>
    %c15 = arith.constant 15 : index
    %c128 = arith.constant 128 : index
    %7 = vector.load %arg5[%c15, %c128] : memref<16x192xf32, #tpu.memory_space<vmem>>, vector<1x64xf32>
    tpu.vector_store %arg5[%c15, %c128], %6 {strides = array<i32>} : memref<16x192xf32, #tpu.memory_space<vmem>>, vector<1x64xf32>,
    %8 = vector.extract_strided_slice %0 {offsets = [1, 0], sizes = [15, 64], strides = [1, 1]} : vector<16x64xf32> to vector<15x64xf32>
    %c0_6 = arith.constant 0 : index
    %c128_7 = arith.constant 128 : index
    %9 = vector.load %arg5[%c0_6, %c128_7] : memref<16x192xf32, #tpu.memory_space<vmem>>, vector<15x64xf32>
    tpu.vector_store %arg5[%c0_6, %c128_7], %8 {strides = array<i32>} : memref<16x192xf32, #tpu.memory_space<vmem>>, vector<15x64xf32>,
    %c0_8 = arith.constant 0 : index
    %c0_9 = arith.constant 0 : index
    %10 = vector.load %arg5[%c0_8, %c0_9] : memref<16x192xf32, #tpu.memory_space<vmem>>, vector<16x192xf32>
    %11 = arith.truncf %10 : vector<16x192xf32> to vector<16x192xbf16>
    %c0_10 = arith.constant 0 : index
    %c0_11 = arith.constant 0 : index
    %12 = vector.load %arg2[%c0_10, %c0_11] : memref<192x128xbf16, #tpu.memory_space<vmem>>, vector<192x128xbf16>
    %cst_12 = arith.constant dense<0.000000e+00> : vector<16x128xf32>
    %13 = tpu.matmul %11, %12, %cst_12 {dimension_numbers = #tpu.dot_dimension_numbers<[1], [0], [0], [1], [0, 0, 1, 1], [], []>} : vector<16x192xbf16>, vector<192x128xbf16>, vector<16x128xf32> -> vector<16x128xf32>
    %c0_13 = arith.constant 0 : index
    %c0_14 = arith.constant 0 : index
    %14 = vector.load %arg3[%c0_13, %c0_14] : memref<16x128xf32, #tpu.memory_space<vmem>>, vector<16x128xf32>
    tpu.vector_store %arg3[%c0_13, %c0_14], %13 {strides = array<i32>} : memref<16x128xf32, #tpu.memory_space<vmem>>, vector<16x128xf32>,
    %cst_15 = arith.constant dense<0.000000e+00> : vector<128xf32>
    %15 = vector.multi_reduction <add>, %13, %cst_15 [0] : vector<16x128xf32> to vector<128xf32>
    %16 = vector.shape_cast %15 : vector<128xf32> to vector<1x128xf32>
    %c0_16 = arith.constant 0 : index
    %c0_17 = arith.constant 0 : index
    %c0_18 = arith.constant 0 : index
    %17 = vector.load %arg4[%c0_16, %c0_17, %c0_18] : memref<1x2x128xf32, #tpu.memory_space<vmem>>, vector<1x1x128xf32>
    %18 = vector.shape_cast %17 : vector<1x1x128xf32> to vector<1x128xf32>
    %19 = vector.shape_cast %16 : vector<1x128xf32> to vector<1x1x128xf32>
    tpu.vector_store %arg4[%c0_16, %c0_17, %c0_18], %19 {strides = array<i32>} : memref<1x2x128xf32, #tpu.memory_space<vmem>>, vector<1x1x128xf32>,
    %20 = arith.mulf %13, %13 : vector<16x128xf32>
    %cst_19 = arith.constant dense<0.000000e+00> : vector<128xf32>
    %21 = vector.multi_reduction <add>, %20, %cst_19 [0] : vector<16x128xf32> to vector<128xf32>
    %22 = vector.shape_cast %21 : vector<128xf32> to vector<1x128xf32>
    %c0_20 = arith.constant 0 : index
    %c1_21 = arith.constant 1 : index
    %c0_22 = arith.constant 0 : index
    %23 = vector.load %arg4[%c0_20, %c1_21, %c0_22] : memref<1x2x128xf32, #tpu.memory_space<vmem>>, vector<1x1x128xf32>
    %24 = vector.shape_cast %23 : vector<1x1x128xf32> to vector<1x128xf32>
    %25 = vector.shape_cast %22 : vector<1x128xf32> to vector<1x1x128xf32>
    tpu.vector_store %arg4[%c0_20, %c1_21, %c0_22], %25 {strides = array<i32>} : memref<1x2x128xf32, #tpu.memory_space<vmem>>, vector<1x1x128xf32>,
    return
  }
  func.func @transform_0(%arg0: i32) -> (i32, i32) {
    %c0_i32 = arith.constant 0 : i32
    %c0_i32_0 = arith.constant 0 : i32
    return %arg0, %c0_i32 : i32, i32
  }
  func.func @transform_1(%arg0: i32) -> (i32, i32) {
    %c0_i32 = arith.constant 0 : i32
    %c0_i32_0 = arith.constant 0 : i32
    %c0_i32_1 = arith.constant 0 : i32
    return %c0_i32, %c0_i32_0 : i32, i32
  }
  func.func @transform_2(%arg0: i32) -> (i32, i32) {
    %c0_i32 = arith.constant 0 : i32
    %c0_i32_0 = arith.constant 0 : i32
    return %arg0, %c0_i32 : i32, i32
  }
  func.func @transform_3(%arg0: i32) -> (i32, i32, i32) {
    %c0_i32 = arith.constant 0 : i32
    %c0_i32_0 = arith.constant 0 : i32
    %c0_i32_1 = arith.constant 0 : i32
    return %arg0, %c0_i32, %c0_i32_0 : i32, i32, i32
  }
}

module attributes {stable_mosaic.version = 11 : i64} {
  func.func @kernel(%arg0: i32, %arg1: memref<16x128xf32, #tpu.memory_space<vmem>>, %arg2: memref<384x128xbf16, #tpu.memory_space<vmem>>, %arg3: memref<1x128xf32, #tpu.memory_space<vmem>>, %arg4: memref<1x128xf32, #tpu.memory_space<vmem>>, %arg5: memref<16x128xf32, #tpu.memory_space<vmem>>, %arg6: memref<1x2x128xf32, #tpu.memory_space<vmem>>, %arg7: memref<16x384xf32, #tpu.memory_space<vmem>>) attributes {dimension_semantics = [#tpu.dimension_semantics<parallel>], iteration_bounds = array<i64: 2>, scalar_prefetch = 0 : i64, scratch_operands = 1 : i64, tpu.core_type = #tpu.core_type<tc>, window_params = [{transform_indices = @transform_0, window_bounds = array<i64: 16, 128>}, {pipeline_mode = #tpu.pipeline_mode<synchronous>, transform_indices = @transform_1, window_bounds = array<i64: 384, 128>}, {pipeline_mode = #tpu.pipeline_mode<synchronous>, transform_indices = @transform_2, window_bounds = array<i64: 1, 128>}, {pipeline_mode = #tpu.pipeline_mode<synchronous>, transform_indices = @transform_3, window_bounds = array<i64: 1, 128>}, {transform_indices = @transform_4, window_bounds = array<i64: 16, 128>}, {transform_indices = @transform_5, window_bounds = array<i64: 1, 2, 128>}]} {
    %c0 = arith.constant 0 : index
    %c0_0 = arith.constant 0 : index
    %0 = vector.load %arg1[%c0, %c0_0] : memref<16x128xf32, #tpu.memory_space<vmem>>, vector<16x128xf32>
    %c0_1 = arith.constant 0 : index
    %c0_2 = arith.constant 0 : index
    %1 = vector.load %arg3[%c0_1, %c0_2] : memref<1x128xf32, #tpu.memory_space<vmem>>, vector<1x128xf32>
    %2 = vector.broadcast %1 : vector<1x128xf32> to vector<16x128xf32>
    %3 = arith.mulf %0, %2 : vector<16x128xf32>
    %c0_3 = arith.constant 0 : index
    %c0_4 = arith.constant 0 : index
    %4 = vector.load %arg4[%c0_3, %c0_4] : memref<1x128xf32, #tpu.memory_space<vmem>>, vector<1x128xf32>
    %5 = vector.broadcast %4 : vector<1x128xf32> to vector<16x128xf32>
    %6 = arith.addf %3, %5 : vector<16x128xf32>
    %cst = arith.constant 0.000000e+00 : f32
    %7 = vector.broadcast %cst : f32 to vector<16x128xf32>
    %8 = arith.maximumf %6, %7 : vector<16x128xf32>
    %cst_5 = arith.constant 0.000000e+00 : f32
    %9 = vector.broadcast %cst_5 : f32 to vector<1x128xf32>
    %c0_6 = arith.constant 0 : index
    %c0_7 = arith.constant 0 : index
    %10 = vector.load %arg7[%c0_6, %c0_7] : memref<16x384xf32, #tpu.memory_space<vmem>>, vector<1x128xf32>
    tpu.vector_store %arg7[%c0_6, %c0_7], %9 {strides = array<i32>} : memref<16x384xf32, #tpu.memory_space<vmem>>, vector<1x128xf32>,
    %11 = vector.extract_strided_slice %8 {offsets = [0, 0], sizes = [15, 128], strides = [1, 1]} : vector<16x128xf32> to vector<15x128xf32>
    %c1 = arith.constant 1 : index
    %c0_8 = arith.constant 0 : index
    %12 = vector.load %arg7[%c1, %c0_8] : memref<16x384xf32, #tpu.memory_space<vmem>>, vector<15x128xf32>
    tpu.vector_store %arg7[%c1, %c0_8], %11 {strides = array<i32>} : memref<16x384xf32, #tpu.memory_space<vmem>>, vector<15x128xf32>,
    %c0_9 = arith.constant 0 : index
    %c128 = arith.constant 128 : index
    %13 = vector.load %arg7[%c0_9, %c128] : memref<16x384xf32, #tpu.memory_space<vmem>>, vector<16x128xf32>
    tpu.vector_store %arg7[%c0_9, %c128], %8 {strides = array<i32>} : memref<16x384xf32, #tpu.memory_space<vmem>>, vector<16x128xf32>,
    %cst_10 = arith.constant 0.000000e+00 : f32
    %14 = vector.broadcast %cst_10 : f32 to vector<1x128xf32>
    %c15 = arith.constant 15 : index
    %c256 = arith.constant 256 : index
    %15 = vector.load %arg7[%c15, %c256] : memref<16x384xf32, #tpu.memory_space<vmem>>, vector<1x128xf32>
    tpu.vector_store %arg7[%c15, %c256], %14 {strides = array<i32>} : memref<16x384xf32, #tpu.memory_space<vmem>>, vector<1x128xf32>,
    %16 = vector.extract_strided_slice %8 {offsets = [1, 0], sizes = [15, 128], strides = [1, 1]} : vector<16x128xf32> to vector<15x128xf32>
    %c0_11 = arith.constant 0 : index
    %c256_12 = arith.constant 256 : index
    %17 = vector.load %arg7[%c0_11, %c256_12] : memref<16x384xf32, #tpu.memory_space<vmem>>, vector<15x128xf32>
    tpu.vector_store %arg7[%c0_11, %c256_12], %16 {strides = array<i32>} : memref<16x384xf32, #tpu.memory_space<vmem>>, vector<15x128xf32>,
    %c0_13 = arith.constant 0 : index
    %c0_14 = arith.constant 0 : index
    %18 = vector.load %arg7[%c0_13, %c0_14] : memref<16x384xf32, #tpu.memory_space<vmem>>, vector<16x384xf32>
    %19 = arith.truncf %18 : vector<16x384xf32> to vector<16x384xbf16>
    %c0_15 = arith.constant 0 : index
    %c0_16 = arith.constant 0 : index
    %20 = vector.load %arg2[%c0_15, %c0_16] : memref<384x128xbf16, #tpu.memory_space<vmem>>, vector<384x128xbf16>
    %cst_17 = arith.constant dense<0.000000e+00> : vector<16x128xf32>
    %21 = tpu.matmul %19, %20, %cst_17 {dimension_numbers = #tpu.dot_dimension_numbers<[1], [0], [0], [1], [0, 0, 1, 1], [], []>} : vector<16x384xbf16>, vector<384x128xbf16>, vector<16x128xf32> -> vector<16x128xf32>
    %c0_18 = arith.constant 0 : index
    %c0_19 = arith.constant 0 : index
    %22 = vector.load %arg5[%c0_18, %c0_19] : memref<16x128xf32, #tpu.memory_space<vmem>>, vector<16x128xf32>
    tpu.vector_store %arg5[%c0_18, %c0_19], %21 {strides = array<i32>} : memref<16x128xf32, #tpu.memory_space<vmem>>, vector<16x128xf32>,
    %cst_20 = arith.constant dense<0.000000e+00> : vector<128xf32>
    %23 = vector.multi_reduction <add>, %21, %cst_20 [0] : vector<16x128xf32> to vector<128xf32>
    %24 = vector.shape_cast %23 : vector<128xf32> to vector<1x128xf32>
    %c0_21 = arith.constant 0 : index
    %c0_22 = arith.constant 0 : index
    %c0_23 = arith.constant 0 : index
    %25 = vector.load %arg6[%c0_21, %c0_22, %c0_23] : memref<1x2x128xf32, #tpu.memory_space<vmem>>, vector<1x1x128xf32>
    %26 = vector.shape_cast %25 : vector<1x1x128xf32> to vector<1x128xf32>
    %27 = vector.shape_cast %24 : vector<1x128xf32> to vector<1x1x128xf32>
    tpu.vector_store %arg6[%c0_21, %c0_22, %c0_23], %27 {strides = array<i32>} : memref<1x2x128xf32, #tpu.memory_space<vmem>>, vector<1x1x128xf32>,
    %28 = arith.mulf %21, %21 : vector<16x128xf32>
    %cst_24 = arith.constant dense<0.000000e+00> : vector<128xf32>
    %29 = vector.multi_reduction <add>, %28, %cst_24 [0] : vector<16x128xf32> to vector<128xf32>
    %30 = vector.shape_cast %29 : vector<128xf32> to vector<1x128xf32>
    %c0_25 = arith.constant 0 : index
    %c1_26 = arith.constant 1 : index
    %c0_27 = arith.constant 0 : index
    %31 = vector.load %arg6[%c0_25, %c1_26, %c0_27] : memref<1x2x128xf32, #tpu.memory_space<vmem>>, vector<1x1x128xf32>
    %32 = vector.shape_cast %31 : vector<1x1x128xf32> to vector<1x128xf32>
    %33 = vector.shape_cast %30 : vector<1x128xf32> to vector<1x1x128xf32>
    tpu.vector_store %arg6[%c0_25, %c1_26, %c0_27], %33 {strides = array<i32>} : memref<1x2x128xf32, #tpu.memory_space<vmem>>, vector<1x1x128xf32>,
    return
  }
  func.func @transform_0(%arg0: i32) -> (i32, i32) {
    %c0_i32 = arith.constant 0 : i32
    %c0_i32_0 = arith.constant 0 : i32
    return %arg0, %c0_i32 : i32, i32
  }
  func.func @transform_1(%arg0: i32) -> (i32, i32) {
    %c0_i32 = arith.constant 0 : i32
    %c0_i32_0 = arith.constant 0 : i32
    %c0_i32_1 = arith.constant 0 : i32
    return %c0_i32, %c0_i32_0 : i32, i32
  }
  func.func @transform_2(%arg0: i32) -> (i32, i32) {
    %c0_i32 = arith.constant 0 : i32
    %c0_i32_0 = arith.constant 0 : i32
    %c0_i32_1 = arith.constant 0 : i32
    return %c0_i32, %c0_i32_0 : i32, i32
  }
  func.func @transform_3(%arg0: i32) -> (i32, i32) {
    %c0_i32 = arith.constant 0 : i32
    %c0_i32_0 = arith.constant 0 : i32
    %c0_i32_1 = arith.constant 0 : i32
    return %c0_i32, %c0_i32_0 : i32, i32
  }
  func.func @transform_4(%arg0: i32) -> (i32, i32) {
    %c0_i32 = arith.constant 0 : i32
    %c0_i32_0 = arith.constant 0 : i32
    return %arg0, %c0_i32 : i32, i32
  }
  func.func @transform_5(%arg0: i32) -> (i32, i32, i32) {
    %c0_i32 = arith.constant 0 : i32
    %c0_i32_0 = arith.constant 0 : i32
    %c0_i32_1 = arith.constant 0 : i32
    return %arg0, %c0_i32, %c0_i32_0 : i32, i32, i32
  }
}

</mosaic_0001>

<llo_original>
// kernel: tile.28
$region0: #{tile.28}
  #allocation0 [shape = 's32[1]{0}', space=sflag, size = 0x4, scoped, tag = 'scoped memory for tile.28']
  %s0 = inlined_call_operand.vmem [shape: f32[8], index: 0, kind: input, shape index: {}]
  %s1 = inlined_call_operand.vmem [shape: f32[16,8], index: 1, kind: output, shape index: {}]
  // Predicated region
  $region2: #{tile.28} parent=0 // pred_check
    _
  $region3: #{tile.28} parent=0 // pred_check_branch
    %3 = sbr.rel (0) target = $region5
  $region4: #{tile.28} parent=0 // pred_region
    _
  $region5: #{tile.28} parent=0 // pred_fallthru
    _
  %v4 = vld [vmem:[%s0] ss:$0 sm:$0xff]
  %5 = vst [vmem:[%s1] sm:$0xff] %v4
  %s6 = scalar_lea.vmem %s1, 8
  %7 = vst [vmem:[%s6] sm:$0xff] %v4

// kernel: tile.29
$region0: #{tile.29}
  %s0 = inlined_call_operand.vmem [shape: f32[16,8], index: 0, kind: input, shape index: {}]
  %s1 = inlined_call_operand.vmem [shape: f32[1,128], index: 1, kind: output, shape index: {}]
  $region1: #{tile.29} parent=0
    #allocation0 [shape = 'u8[4096]{0}', space=vmem, size = 0x1000, scoped, tag = 'scoped mem for output reshape']
    %v2 = vld [vmem:[%s0] sm:$0x1]
    %vm3 = vcmask 64512
    %4 = vst.msk [vmem:[#allocation0] sm:$0x1] %vm3, %v2
    %s5 = scalar_lea.vmem %s0, 15
    %v6 = vld [vmem:[%s5] sm:$0x1]
    %7 = vrot.lane.b32.xlu0 %v6, 120
    %v8 = vpop.permute.xlu0 %7
    %vm9 = vcmask 1048512
    %10 = vst.msk [vmem:[#allocation0] sm:$0x1] %vm9, %v8
    %s11 = scalar_lea.vmem %s0, 14
    %v12 = vld [vmem:[%s11] sm:$0x1]
    %13 = vrot.lane.b32.xlu0 %v12, 112
    %v14 = vpop.permute.xlu0 %13
    %vm15 = vcmask 982912
    %16 = vst.msk [vmem:[#allocation0] sm:$0x1] %vm15, %v14
    %s17 = scalar_lea.vmem %s0, 13
    %v18 = vld [vmem:[%s17] sm:$0x1]
    %19 = vrot.lane.b32.xlu0 %v18, 104
    %v20 = vpop.permute.xlu0 %19
    %vm21 = vcmask 917312
    %22 = vst.msk [vmem:[#allocation0] sm:$0x1] %vm21, %v20
    %s23 = scalar_lea.vmem %s0, 12
    %v24 = vld [vmem:[%s23] sm:$0x1]
    %25 = vrot.lane.b32.xlu0 %v24, 96
    %v26 = vpop.permute.xlu0 %25
    %vm27 = vcmask 851712
    %28 = vst.msk [vmem:[#allocation0] sm:$0x1] %vm27, %v26
    %s29 = scalar_lea.vmem %s0, 11
    %v30 = vld [vmem:[%s29] sm:$0x1]
    %31 = vrot.lane.b32.xlu0 %v30, 88
    %v32 = vpop.permute.xlu0 %31
    %vm33 = vcmask 786112
    %34 = vst.msk [vmem:[#allocation0] sm:$0x1] %vm33, %v32
    %s35 = scalar_lea.vmem %s0, 10
    %v36 = vld [vmem:[%s35] sm:$0x1]
    %37 = vrot.lane.b32.xlu0 %v36, 80
    %v38 = vpop.permute.xlu0 %37
    %vm39 = vcmask 720512
    %40 = vst.msk [vmem:[#allocation0] sm:$0x1] %vm39, %v38
    %s41 = scalar_lea.vmem %s0, 9
    %v42 = vld [vmem:[%s41] sm:$0x1]
    %43 = vrot.lane.b32.xlu0 %v42, 72
    %v44 = vpop.permute.xlu0 %43
    %vm45 = vcmask 654912
    %46 = vst.msk [vmem:[#allocation0] sm:$0x1] %vm45, %v44
    %s47 = scalar_lea.vmem %s0, 8
    %v48 = vld [vmem:[%s47] sm:$0x1]
    %49 = vrot.lane.b32.xlu0 %v48, 64
    %v50 = vpop.permute.xlu0 %49
    %vm51 = vcmask 589312
    %52 = vst.msk [vmem:[#allocation0] sm:$0x1] %vm51, %v50
    %s53 = scalar_lea.vmem %s0, 7
    %v54 = vld [vmem:[%s53] sm:$0x1]
    %55 = vrot.lane.b32.xlu0 %v54, 56
    %v56 = vpop.permute.xlu0 %55
    %vm57 = vcmask 523712
    %58 = vst.msk [vmem:[#allocation0] sm:$0x1] %vm57, %v56
    %s59 = scalar_lea.vmem %s0, 6
    %v60 = vld [vmem:[%s59] sm:$0x1]
    %61 = vrot.lane.b32.xlu0 %v60, 48
    %v62 = vpop.permute.xlu0 %61
    %vm63 = vcmask 458112
    %64 = vst.msk [vmem:[#allocation0] sm:$0x1] %vm63, %v62
    %s65 = scalar_lea.vmem %s0, 5
    %v66 = vld [vmem:[%s65] sm:$0x1]
    %67 = vrot.lane.b32.xlu0 %v66, 40
    %v68 = vpop.permute.xlu0 %67
    %vm69 = vcmask 392512
    %70 = vst.msk [vmem:[#allocation0] sm:$0x1] %vm69, %v68
    %s71 = scalar_lea.vmem %s0, 4
    %v72 = vld [vmem:[%s71] sm:$0x1]
    %73 = vrot.lane.b32.xlu0 %v72, 32
    %v74 = vpop.permute.xlu0 %73
    %vm75 = vcmask 326912
    %76 = vst.msk [vmem:[#allocation0] sm:$0x1] %vm75, %v74
    %s77 = scalar_lea.vmem %s0, 3
    %v78 = vld [vmem:[%s77] sm:$0x1]
    %79 = vrot.lane.b32.xlu0 %v78, 24
    %v80 = vpop.permute.xlu0 %79
    %vm81 = vcmask 261312
    %82 = vst.msk [vmem:[#allocation0] sm:$0x1] %vm81, %v80
    %s83 = scalar_lea.vmem %s0, 2
    %v84 = vld [vmem:[%s83] sm:$0x1]
    %85 = vrot.lane.b32.xlu0 %v84, 16
    %v86 = vpop.permute.xlu0 %85
    %vm87 = vcmask 195712
    %88 = vst.msk [vmem:[#allocation0] sm:$0x1] %vm87, %v86
    %s89 = scalar_lea.vmem %s0, 1
    %v90 = vld [vmem:[%s89] sm:$0x1]
    %91 = vrot.lane.b32.xlu0 %v90, 8
    %v92 = vpop.permute.xlu0 %91
    %vm93 = vcmask 130112
    %94 = vst.msk [vmem:[#allocation0] sm:$0x1] %vm93, %v92
    %s96 = ssub.s32 2, 1
    %v97 = vld [vmem:[#allocation0] sm:%s96]
    %s99 = ssub.s32 2, 1
    %100 = vst [vmem:[%s1] sm:%s99] %v97

// kernel: unet_conv2_forward.2
$region0: #{unet_conv2_forward.2}
  #allocation0 [shape = 'u32[]', space=smem, size = 0x4, offset = 0x4, fixed_abs, tag = 'smem constant byte address 0x4 - core index']
  #allocation1 [shape = 'u32[72,128]{1,0:T(1,128)}', space=vmem, size = 0x9000, scoped, tag = 'internal scratch']
  #allocation2 [shape = 'f32[16,192]{1,0:T(8,128)}', space=vmem, size = 0x4000, scoped, tag = 'scratch operand']
  %s0 = inlined_call_operand.vmem [shape: f32[32,64], index: 0, kind: input, shape index: {}]
  %s1 = inlined_call_operand.vmem [shape: bf16[192,128], index: 1, kind: input, shape index: {}]
  %s2 = inlined_call_operand.vmem [shape: f32[32,128], index: 2, kind: output, shape index: {0}]
  %s3 = inlined_call_operand.vmem [shape: f32[2,2,128], index: 3, kind: output, shape index: {1}]
  %4 = xla_tuple %s2, %s3
  %s5 = sld [smem:[#allocation0]]
  $region49: #{unet_conv2_forward.2} parent=0
    _
  %s7 = ssub.s32 1, %s5
  %s8 = scalar_select 0, %s7, %s5
  loop: start=0, step=1, limit=4
  $region2: #{unet_conv2_forward.2} parent=0 // loop_pre_header
    _
  $region3: #{unet_conv2_forward.2} parent=0 // loop_header
    %s10 = sphi 0, %s14
    %p11 = scmp.ge.s32.totalorder %s10, 4
    %s20 = sphi 0, %s22
    %s23 = sphi 0, %s20
    %s24 = sphi 0, %s23
    %s40 = sphi 0, %s24
    %s44 = sphi 0, %s44
    %s46 = sphi 0, %s44
    %s47 = sphi 0, %s46
    %s61 = sphi 0, %s47
    %s67 = sphi 0, %s69
    %s70 = sphi 0, %s67
    %s71 = sphi 0, %s70
    %s87 = sphi 0, %s71
    %s93 = sphi 0, %s95
    %s96 = sphi 0, %s93
    %s97 = sphi 0, %s96
    %s113 = sphi 0, %s97
  $region4: #{unet_conv2_forward.2} parent=0 // loop_header_branch
    %13 = sbr.rel (%p11) target = $region8
  $region5: #{unet_conv2_forward.2} parent=0 // loop_body
    %s15 = ssub.s32 %s10, 1
    %s16 = ssub.s32 %s10, 2
    %s17 = sadd.s32 %s10, 1
    %s18 = ssub.s32 %s10, %s17
    %p19 = scmp.eq.s32.totalorder %s18, 0
    %s21 = sadd.s32 %s20, 1
    %s22 = scalar_select %p19, %s20, %s21
    %p25 = pneg %p19
    %p26 = scmp.eq.s32.totalorder %s10, 1
    %p27 = por %p25, %p26
    %p28 = scmp.ne.s32.totalorder %s20, %s23
    %p29 = scmp.eq.s32.totalorder %s10, 0
    %p30 = por %p28, %p29
    %p31 = scmp.ne.s32.totalorder %s20, %s23
    %p32 = scmp.eq.s32.totalorder %s15, 1
    %p33 = por %p31, %p32
    %p34 = scmp.ne.s32.totalorder %s23, %s24
    %p35 = scmp.eq.s32.totalorder %s15, 0
    %p36 = por %p34, %p35
    %p37 = scmp.ne.s32.totalorder %s23, %s24
    %p38 = scmp.eq.s32.totalorder %s16, 1
    %p39 = por %p37, %p38
    %p41 = scmp.ne.s32.totalorder %s24, %s40
    %p42 = scmp.eq.s32.totalorder %s16, 0
    %p43 = por %p41, %p42
    %s45 = sadd.s32 %s44, 1
    %p48 = scmp.eq.s32.totalorder %s10, 1
    %p49 = scmp.ne.s32.totalorder %s44, %s46
    %p50 = scmp.eq.s32.totalorder %s10, 0
    %p51 = por %p49, %p50
    %p52 = scmp.ne.s32.totalorder %s44, %s46
    %p53 = scmp.eq.s32.totalorder %s15, 1
    %p54 = por %p52, %p53
    %p55 = scmp.ne.s32.totalorder %s46, %s47
    %p56 = scmp.eq.s32.totalorder %s15, 0
    %p57 = por %p55, %p56
    %p58 = scmp.ne.s32.totalorder %s46, %s47
    %p59 = scmp.eq.s32.totalorder %s16, 1
    %p60 = por %p58, %p59
    %p62 = scmp.ne.s32.totalorder %s47, %s61
    %p63 = scmp.eq.s32.totalorder %s16, 0
    %p64 = por %p62, %p63
    %s65 = ssub.s32 %s10, %s17
    %p66 = scmp.eq.s32.totalorder %s65, 0
    %s68 = sadd.s32 %s67, 1
    %s69 = scalar_select %p66, %s67, %s68
    %p72 = pneg %p66
    %p73 = scmp.eq.s32.totalorder %s10, 1
    %p74 = por %p72, %p73
    %p75 = scmp.ne.s32.totalorder %s67, %s70
    %p76 = scmp.eq.s32.totalorder %s10, 0
    %p77 = por %p75, %p76
    %p78 = scmp.ne.s32.totalorder %s67, %s70
    %p79 = scmp.eq.s32.totalorder %s15, 1
    %p80 = por %p78, %p79
    %p81 = scmp.ne.s32.totalorder %s70, %s71
    %p82 = scmp.eq.s32.totalorder %s15, 0
    %p83 = por %p81, %p82
    %p84 = scmp.ne.s32.totalorder %s70, %s71
    %p85 = scmp.eq.s32.totalorder %s16, 1
    %p86 = por %p84, %p85
    %p88 = scmp.ne.s32.totalorder %s71, %s87
    %p89 = scmp.eq.s32.totalorder %s16, 0
    %p90 = por %p88, %p89
    %s91 = ssub.s32 %s10, %s17
    %p92 = scmp.eq.s32.totalorder %s91, 0
    %s94 = sadd.s32 %s93, 1
    %s95 = scalar_select %p92, %s93, %s94
    %p98 = pneg %p92
    %p99 = scmp.eq.s32.totalorder %s10, 1
    %p100 = por %p98, %p99
    %p101 = scmp.ne.s32.totalorder %s93, %s96
    %p102 = scmp.eq.s32.totalorder %s10, 0
    %p103 = por %p101, %p102
    %p104 = scmp.ne.s32.totalorder %s93, %s96
    %p105 = scmp.eq.s32.totalorder %s15, 1
    %p106 = por %p104, %p105
    %p107 = scmp.ne.s32.totalorder %s96, %s97
    %p108 = scmp.eq.s32.totalorder %s15, 0
    %p109 = por %p107, %p108
    %p110 = scmp.ne.s32.totalorder %s96, %s97
    %p111 = scmp.eq.s32.totalorder %s16, 1
    %p112 = por %p110, %p111
    %p114 = scmp.ne.s32.totalorder %s97, %s113
    %p115 = scmp.eq.s32.totalorder %s16, 0
    %p116 = por %p114, %p115
    %p117 = scmp.le.s32.totalorder 1, %s10
    %p118 = scmp.lt.s32.totalorder %s10, 3
    %p119 = pnand %p117, %p118
    %p120 = pneg %p119
    // Predicated region
    $region9: #{unet_conv2_forward.2} parent=5 // pred_check
      _
    $region10: #{unet_conv2_forward.2} parent=5 // pred_check_branch
      %122 = sbr.rel (%p119) target = $region12
    $region11: #{unet_conv2_forward.2} parent=5 // pred_region
      %s123 = ssub.s32 %s10, 1
      // Predicated region
      $region13: #{unet_conv2_forward.2} parent=11 // pred_check
        %p124 = pneg %p57
      $region14: #{unet_conv2_forward.2} parent=11 // pred_check_branch
        %126 = sbr.rel (%p124) target = $region16
      $region15: #{unet_conv2_forward.2} parent=11 // pred_region
        _
      $region16: #{unet_conv2_forward.2} parent=11 // pred_fallthru
        _
    $region12: #{unet_conv2_forward.2} parent=5 // pred_fallthru
      _
    %p127 = scmp.lt.s32.totalorder %s10, 2
    // Predicated region
    $region17: #{unet_conv2_forward.2} parent=5 // pred_check
      %p128 = pneg %p127
    $region18: #{unet_conv2_forward.2} parent=5 // pred_check_branch
      %130 = sbr.rel (%p128) target = $region20
    $region19: #{unet_conv2_forward.2} parent=5 // pred_region
      // Predicated region
      $region21: #{unet_conv2_forward.2} parent=19 // pred_check
        %p131 = pneg %p30
      $region22: #{unet_conv2_forward.2} parent=19 // pred_check_branch
        %133 = sbr.rel (%p131) target = $region24
      $region23: #{unet_conv2_forward.2} parent=19 // pred_region
        %s134 = smul.u32 2, %s10
        %p135 = scmp.lt.s32.totalorder %s134, 3
        %s136 = scalar_select %p135, %s134, 3
        %s137 = smul.addr %s136, 8
        %s138 = scalar_lea.vmem %s0, %s137
        %s139 = smul.u32 2, %s10
      $region24: #{unet_conv2_forward.2} parent=19 // pred_fallthru
        _
    $region20: #{unet_conv2_forward.2} parent=5 // pred_fallthru
      _
    %p140 = scmp.le.s32.totalorder 1, %s10
    %p141 = scmp.lt.s32.totalorder %s10, 3
    %p142 = pnand %p140, %p141
    %p143 = pneg %p142
    // Predicated region
    $region25: #{unet_conv2_forward.2} parent=5 // pred_check
      _
    $region26: #{unet_conv2_forward.2} parent=5 // pred_check_branch
      %145 = sbr.rel (%p142) target = $region28
    $region27: #{unet_conv2_forward.2} parent=5 // pred_region
      %s146 = ssub.s32 %s10, 1
      %s147 = smul.u32 2, %s15
      %p148 = scmp.lt.s32.totalorder %s147, 3
      %s149 = scalar_select %p148, %s147, 3
      %s150 = smul.addr %s149, 8
      %s151 = scalar_lea.vmem %s0, %s150
      %p152 = pneg %p36
      %p153 = pneg %p33
      %p154 = pneg %p57
      %p155 = pneg %p54
      %p156 = pneg %p83
      %p157 = pneg %p80
      %s158 = smul.u32 2, %s15
      %p159 = scmp.lt.s32.totalorder %s158, 3
      %s160 = scalar_select %p159, %s158, 3
      %s161 = smul.addr %s160, 8
      %s162 = scalar_lea.vmem %s2, %s161
      %p163 = pneg %p109
      %p164 = pneg %p106
      %p165 = scmp.lt.s32.totalorder %s15, 1
      %s166 = scalar_select %p165, %s15, 1
      %s167 = smul.addr %s166, 2
      %s168 = scalar_lea.vmem %s3, %s167
      %s169 = smul.u32 2, %s15
      %p170 = scmp.lt.s32.totalorder %s169, 3
      %s171 = scalar_select %p170, %s169, 3
      %s172 = smul.addr %s171, 8
      %s173 = scalar_lea.vmem %s0, %s172
      %s174 = smul.u32 2, %s15
      %s175 = smul.u32 2, %s15
      %p176 = scmp.lt.s32.totalorder %s175, 3
      %s177 = scalar_select %p176, %s175, 3
      %s178 = smul.addr %s177, 8
      %s179 = scalar_lea.vmem %s2, %s178
      %s180 = smul.u32 2, %s15
      %p181 = scmp.lt.s32.totalorder %s15, 1
      %s182 = scalar_select %p181, %s15, 1
      %s183 = smul.addr %s182, 2
      %s184 = scalar_lea.vmem %s3, %s183
      %v186 = vld [vmem:[%s173] sm:$0xff]
      %v187 = vld [vmem:[%s173 + $0x8] sm:$0xff]
      %vm188 = vcmask 516096
      %189 = vst.msk [vmem:[#allocation2] sm:$0x1] %vm188, 0.0
      %vm192 = vcmask 1040384
      %v193 = vrot.slane %v186, 7
      %v194 = vrot.slane %v187, 7
      %v195 = vsel %vm192, %v193, %v194
      %vm198 = vcmask 523265
      %199 = vst.msk [vmem:[#allocation2] sm:$0xfe] %vm198, %v193
      %vm200 = vcmask 523264
      %201 = vst.msk [vmem:[#allocation2 + $0x10] sm:$0xff] %vm200, %v195
      %202 = vrot.lane.b32.xlu0 %v186, 64
      %v203 = vpop.permute.xlu0 %202
      %204 = vrot.lane.b32.xlu0 %v187, 64
      %v205 = vpop.permute.xlu0 %204
      %vm208 = vcmask 1048064
      %209 = vst.msk [vmem:[#allocation2] sm:$0xff] %vm208, %v203
      %210 = vst.msk [vmem:[#allocation2 + $0x10] sm:$0xff] %vm208, %v205
      %211 = vst.msk [vmem:[#allocation2 + $0x1f] sm:$0x1] %vm188, 0.0
      %vm212 = vcmask 1046528
      %v213 = vrot.slane %v186, 1
      %v214 = vrot.slane %v187, 1
      %v215 = vsel %vm212, %v213, %v214
      %218 = vst.msk [vmem:[#allocation2 + $0x8] sm:$0xff] %vm200, %v215
      %vm219 = vcmask 522240
      %220 = vst.msk [vmem:[#allocation2 + $0x18] sm:$0x7f] %vm219, %v214
      %v221 = vld [vmem:[#allocation2] sm:$0xff]
      %v222 = vld [vmem:[#allocation2 + $0x8] sm:$0xff]
      %v223 = vld [vmem:[#allocation2 + $0x10] sm:$0xff]
      %v224 = vld [vmem:[#allocation2 + $0x18] sm:$0xff]
      %v225 = vpack.c.bf16 %v223, %v221
      %v226 = vpack.c.bf16 %v224, %v222
      %v227 = vld [vmem:[%s1] sm:$0xf]
      %v228 = vld [vmem:[%s1 + $0x4] sm:$0xf]
      %v229 = vld [vmem:[%s1 + $0x8] sm:$0xf]
      %v230 = vld [vmem:[%s1 + $0xc] sm:$0xf]
      %v231 = vld [vmem:[%s1 + $0x10] sm:$0xf]
      %v232 = vld [vmem:[%s1 + $0x14] sm:$0xf]
      %v233 = vld [vmem:[%s1 + $0x18] sm:$0xf]
      %v234 = vld [vmem:[%s1 + $0x1c] sm:$0xf]
      %v235 = vld [vmem:[%s1 + $0x20] sm:$0xf]
      %v236 = vld [vmem:[%s1 + $0x24] sm:$0xf]
      %v237 = vld [vmem:[%s1 + $0x28] sm:$0xf]
      %v238 = vld [vmem:[%s1 + $0x2c] sm:$0xf]
      %v239 = vld [vmem:[%s1 + $0x30] sm:$0xf]
      %v240 = vld [vmem:[%s1 + $0x34] sm:$0xf]
      %v241 = vld [vmem:[%s1 + $0x38] sm:$0xf]
      %v242 = vld [vmem:[%s1 + $0x3c] sm:$0xf]
      %v243 = vld [vmem:[%s1 + $0x40] sm:$0xf]
      %v244 = vld [vmem:[%s1 + $0x44] sm:$0xf]
      %v245 = vld [vmem:[%s1 + $0x48] sm:$0xf]
      %v246 = vld [vmem:[%s1 + $0x4c] sm:$0xf]
      %v247 = vld [vmem:[%s1 + $0x50] sm:$0xf]
      %v248 = vld [vmem:[%s1 + $0x54] sm:$0xf]
      %v249 = vld [vmem:[%s1 + $0x58] sm:$0xf]
      %v250 = vld [vmem:[%s1 + $0x5c] sm:$0xf]
      %v275 = vunpack.c.l.b16 %v227
      %v276 = vunpack.c.l.b16 %v228
      %v277 = vunpack.c.l.b16 %v229
      %v278 = vunpack.c.l.b16 %v230
      %v279 = vunpack.c.l.b16 %v231
      %v280 = vunpack.c.l.b16 %v232
      %v281 = vunpack.c.l.b16 %v233
      %v282 = vunpack.c.l.b16 %v234
      %v283 = vunpack.c.l.b16 %v235
      %v284 = vunpack.c.l.b16 %v236
      %v285 = vunpack.c.l.b16 %v237
      %v286 = vunpack.c.l.b16 %v238
      %v287 = vunpack.c.l.b16 %v239
      %v288 = vunpack.c.l.b16 %v240
      %v289 = vunpack.c.l.b16 %v241
      %v290 = vunpack.c.l.b16 %v242
      %v291 = vunpack.c.l.b16 %v243
      %v292 = vunpack.c.l.b16 %v244
      %v293 = vunpack.c.l.b16 %v245
      %v294 = vunpack.c.l.b16 %v246
      %v295 = vunpack.c.l.b16 %v247
      %v296 = vunpack.c.l.b16 %v248
      %v297 = vunpack.c.l.b16 %v249
      %v298 = vunpack.c.l.b16 %v250
      %v299 = vpack.c.b16 %v276, %v275
      %v300 = vpack.c.b16 %v278, %v277
      %v301 = vpack.c.b16 %v280, %v279
      %v302 = vpack.c.b16 %v282, %v281
      %v303 = vpack.c.b16 %v284, %v283
      %v304 = vpack.c.b16 %v286, %v285
      %v305 = vpack.c.b16 %v288, %v287
      %v306 = vpack.c.b16 %v290, %v289
      %v307 = vpack.c.b16 %v292, %v291
      %v308 = vpack.c.b16 %v294, %v293
      %v309 = vpack.c.b16 %v296, %v295
      %v310 = vpack.c.b16 %v298, %v297
      %v324 = vsel %vm200, %v226, 0
      %326 = vmatpush.bf16.msra.mxu0 %v306
      %327 = vmatpush.bf16.msra.mxu0 %v305
      %328 = vmatpush.bf16.msra.mxu0 %v304
      %329 = vmatpush.bf16.msra.mxu0 %v303
      %330 = vmatpush.bf16.msra.mxu0 %v302
      %331 = vmatpush.bf16.msra.mxu0 %v301
      %332 = vmatpush.bf16.msra.mxu0 %v300
      %333 = vmatpush.bf16.msra.mxu0 %v299
      %334 = vmatmul.bf16.gmra.mxu0 %v225
      %v335 = vpop.f32.mrf.mxu0
      %v336 = vadd.f32 0.0, %v335
      %v337 = vpop.f32.mrf.mxu0
      %v338 = vadd.f32 0.0, %v337
      %339 = vdwg.mxu0
      %340 = vmatpush.bf16.msra.mxu0 0
      %341 = vmatpush.bf16.msra.mxu0 0
      %342 = vmatpush.bf16.msra.mxu0 0
      %343 = vmatpush.bf16.msra.mxu0 0
      %344 = vmatpush.bf16.msra.mxu0 %v310
      %345 = vmatpush.bf16.msra.mxu0 %v309
      %346 = vmatpush.bf16.msra.mxu0 %v308
      %347 = vmatpush.bf16.msra.mxu0 %v307
      %348 = vmatmul.bf16.gmra.mxu0 %v324
      %v349 = vpop.f32.mrf.mxu0
      %v350 = vadd.f32 %v336, %v349
      %v351 = vpop.f32.mrf.mxu0
      %v352 = vadd.f32 %v338, %v351
      %353 = vdwg.mxu0
      %354 = vst [vmem:[%s179] sm:$0xff] %v350
      %355 = vst [vmem:[%s179 + $0x8] sm:$0xff] %v352
      %v356 = vadd.f32 %v350, %v352
      %v357 = vrot.slane %v356, 4
      %v358 = vadd.f32 %v356, %v357
      %v359 = vrot.slane %v358, 2
      %v360 = vadd.f32 %v358, %v359
      %v361 = vrot.slane %v360, 1
      %v362 = vadd.f32 %v360, %v361
      %363 = vst [vmem:[%s184] sm:$0x1] %v362
      %v364 = vmul.f32 %v350, %v350
      %v365 = vmul.f32 %v352, %v352
      %v366 = vadd.f32 %v364, %v365
      %v367 = vrot.slane %v366, 4
      %v368 = vadd.f32 %v366, %v367
      %v369 = vrot.slane %v368, 2
      %v370 = vadd.f32 %v368, %v369
      %v371 = vrot.slane %v370, 1
      %v372 = vadd.f32 %v370, %v371
      %373 = vst [vmem:[%s184 + $0x1] sm:$0x1] %v372
      %s374 = smul.u32 2, %s15
      %p375 = scmp.lt.s32.totalorder %s374, 3
      %s376 = scalar_select %p375, %s374, 3
      %s377 = smul.addr %s376, 8
      %s378 = scalar_lea.vmem %s2, %s377
      %p379 = scmp.lt.s32.totalorder %s15, 1
      %s380 = scalar_select %p379, %s15, 1
      %s381 = smul.addr %s380, 2
      %s382 = scalar_lea.vmem %s3, %s381
      // Predicated region
      $region29: #{unet_conv2_forward.2} parent=27 // pred_check
        %p383 = pneg %p80
      $region30: #{unet_conv2_forward.2} parent=27 // pred_check_branch
        %385 = sbr.rel (%p383) target = $region32
      $region31: #{unet_conv2_forward.2} parent=27 // pred_region
        %s386 = smul.u32 2, %s15
      $region32: #{unet_conv2_forward.2} parent=27 // pred_fallthru
        _
      // Predicated region
      $region33: #{unet_conv2_forward.2} parent=27 // pred_check
        %p387 = pneg %p106
      $region34: #{unet_conv2_forward.2} parent=27 // pred_check_branch
        %389 = sbr.rel (%p387) target = $region36
      $region35: #{unet_conv2_forward.2} parent=27 // pred_region
        _
      $region36: #{unet_conv2_forward.2} parent=27 // pred_fallthru
        _
    $region28: #{unet_conv2_forward.2} parent=5 // pred_fallthru
      _
    %p390 = scmp.le.s32.totalorder 2, %s10
    // Predicated region
    $region37: #{unet_conv2_forward.2} parent=5 // pred_check
      %p391 = pneg %p390
    $region38: #{unet_conv2_forward.2} parent=5 // pred_check_branch
      %393 = sbr.rel (%p391) target = $region40
    $region39: #{unet_conv2_forward.2} parent=5 // pred_region
      %s394 = ssub.s32 %s10, 2
      // Predicated region
      $region41: #{unet_conv2_forward.2} parent=39 // pred_check
        %p395 = pneg %p86
      $region42: #{unet_conv2_forward.2} parent=39 // pred_check_branch
        %397 = sbr.rel (%p395) target = $region44
      $region43: #{unet_conv2_forward.2} parent=39 // pred_region
        %s398 = smul.u32 2, %s16
        %p399 = scmp.lt.s32.totalorder %s398, 3
        %s400 = scalar_select %p399, %s398, 3
        %s401 = smul.addr %s400, 8
        %s402 = scalar_lea.vmem %s2, %s401
      $region44: #{unet_conv2_forward.2} parent=39 // pred_fallthru
        _
      // Predicated region
      $region45: #{unet_conv2_forward.2} parent=39 // pred_check
        %p403 = pneg %p112
      $region46: #{unet_conv2_forward.2} parent=39 // pred_check_branch
        %405 = sbr.rel (%p403) target = $region48
      $region47: #{unet_conv2_forward.2} parent=39 // pred_region
        %p406 = scmp.lt.s32.totalorder %s16, 1
        %s407 = scalar_select %p406, %s16, 1
        %s408 = smul.addr %s407, 2
        %s409 = scalar_lea.vmem %s3, %s408
      $region48: #{unet_conv2_forward.2} parent=39 // pred_fallthru
        _
    $region40: #{unet_conv2_forward.2} parent=5 // pred_fallthru
      _
  $region6: #{unet_conv2_forward.2} parent=0 // loop_footer
    %s14 = sadd.s32 1, %s10
  $region7: #{unet_conv2_forward.2} parent=0 // loop_footer_branch
    %9 = sbr.rel target = $region3
  $region8: #{unet_conv2_forward.2} parent=0 // loop_exit
    _

// kernel: unet_conv2_forward.3
$region0: #{unet_conv2_forward.3}
  #allocation0 [shape = 'u32[]', space=smem, size = 0x4, offset = 0x4, fixed_abs, tag = 'smem constant byte address 0x4 - core index']
  #allocation1 [shape = 'u32[72,128]{1,0:T(1,128)}', space=vmem, size = 0x9000, scoped, tag = 'internal scratch']
  #allocation2 [shape = 'f32[16,384]{1,0:T(8,128)}', space=vmem, size = 0x6000, scoped, tag = 'scratch operand']
  %s0 = inlined_call_operand.vmem [shape: f32[32,128], index: 0, kind: input, shape index: {}]
  %s1 = inlined_call_operand.vmem [shape: bf16[384,128], index: 1, kind: input, shape index: {}]
  %s2 = inlined_call_operand.vmem [shape: f32[1,128], index: 2, kind: input, shape index: {}]
  %s3 = inlined_call_operand.vmem [shape: f32[1,128], index: 3, kind: input, shape index: {}]
  %s4 = inlined_call_operand.vmem [shape: f32[32,128], index: 4, kind: output, shape index: {0}]
  %s5 = inlined_call_operand.vmem [shape: f32[2,2,128], index: 5, kind: output, shape index: {1}]
  %6 = xla_tuple %s4, %s5
  %s7 = sld [smem:[#allocation0]]
  $region57: #{unet_conv2_forward.3} parent=0
    _
  %s9 = ssub.s32 1, %s7
  %s10 = scalar_select 0, %s9, %s7
  loop: start=0, step=1, limit=4
  $region2: #{unet_conv2_forward.3} parent=0 // loop_pre_header
    _
  $region3: #{unet_conv2_forward.3} parent=0 // loop_header
    %s12 = sphi 0, %s16
    %p13 = scmp.ge.s32.totalorder %s12, 4
    %s22 = sphi 0, %s24
    %s25 = sphi 0, %s22
    %s26 = sphi 0, %s25
    %s42 = sphi 0, %s26
    %s46 = sphi 0, %s46
    %s48 = sphi 0, %s46
    %s49 = sphi 0, %s48
    %s63 = sphi 0, %s49
    %s67 = sphi 0, %s67
    %s69 = sphi 0, %s67
    %s70 = sphi 0, %s69
    %s84 = sphi 0, %s70
    %s88 = sphi 0, %s88
    %s90 = sphi 0, %s88
    %s91 = sphi 0, %s90
    %s105 = sphi 0, %s91
    %s111 = sphi 0, %s113
    %s114 = sphi 0, %s111
    %s115 = sphi 0, %s114
    %s131 = sphi 0, %s115
    %s137 = sphi 0, %s139
    %s140 = sphi 0, %s137
    %s141 = sphi 0, %s140
    %s157 = sphi 0, %s141
  $region4: #{unet_conv2_forward.3} parent=0 // loop_header_branch
    %15 = sbr.rel (%p13) target = $region8
  $region5: #{unet_conv2_forward.3} parent=0 // loop_body
    %s17 = ssub.s32 %s12, 1
    %s18 = ssub.s32 %s12, 2
    %s19 = sadd.s32 %s12, 1
    %s20 = ssub.s32 %s12, %s19
    %p21 = scmp.eq.s32.totalorder %s20, 0
    %s23 = sadd.s32 %s22, 1
    %s24 = scalar_select %p21, %s22, %s23
    %p27 = pneg %p21
    %p28 = scmp.eq.s32.totalorder %s12, 1
    %p29 = por %p27, %p28
    %p30 = scmp.ne.s32.totalorder %s22, %s25
    %p31 = scmp.eq.s32.totalorder %s12, 0
    %p32 = por %p30, %p31
    %p33 = scmp.ne.s32.totalorder %s22, %s25
    %p34 = scmp.eq.s32.totalorder %s17, 1
    %p35 = por %p33, %p34
    %p36 = scmp.ne.s32.totalorder %s25, %s26
    %p37 = scmp.eq.s32.totalorder %s17, 0
    %p38 = por %p36, %p37
    %p39 = scmp.ne.s32.totalorder %s25, %s26
    %p40 = scmp.eq.s32.totalorder %s18, 1
    %p41 = por %p39, %p40
    %p43 = scmp.ne.s32.totalorder %s26, %s42
    %p44 = scmp.eq.s32.totalorder %s18, 0
    %p45 = por %p43, %p44
    %s47 = sadd.s32 %s46, 1
    %p50 = scmp.eq.s32.totalorder %s12, 1
    %p51 = scmp.ne.s32.totalorder %s46, %s48
    %p52 = scmp.eq.s32.totalorder %s12, 0
    %p53 = por %p51, %p52
    %p54 = scmp.ne.s32.totalorder %s46, %s48
    %p55 = scmp.eq.s32.totalorder %s17, 1
    %p56 = por %p54, %p55
    %p57 = scmp.ne.s32.totalorder %s48, %s49
    %p58 = scmp.eq.s32.totalorder %s17, 0
    %p59 = por %p57, %p58
    %p60 = scmp.ne.s32.totalorder %s48, %s49
    %p61 = scmp.eq.s32.totalorder %s18, 1
    %p62 = por %p60, %p61
    %p64 = scmp.ne.s32.totalorder %s49, %s63
    %p65 = scmp.eq.s32.totalorder %s18, 0
    %p66 = por %p64, %p65
    %s68 = sadd.s32 %s67, 1
    %p71 = scmp.eq.s32.totalorder %s12, 1
    %p72 = scmp.ne.s32.totalorder %s67, %s69
    %p73 = scmp.eq.s32.totalorder %s12, 0
    %p74 = por %p72, %p73
    %p75 = scmp.ne.s32.totalorder %s67, %s69
    %p76 = scmp.eq.s32.totalorder %s17, 1
    %p77 = por %p75, %p76
    %p78 = scmp.ne.s32.totalorder %s69, %s70
    %p79 = scmp.eq.s32.totalorder %s17, 0
    %p80 = por %p78, %p79
    %p81 = scmp.ne.s32.totalorder %s69, %s70
    %p82 = scmp.eq.s32.totalorder %s18, 1
    %p83 = por %p81, %p82
    %p85 = scmp.ne.s32.totalorder %s70, %s84
    %p86 = scmp.eq.s32.totalorder %s18, 0
    %p87 = por %p85, %p86
    %s89 = sadd.s32 %s88, 1
    %p92 = scmp.eq.s32.totalorder %s12, 1
    %p93 = scmp.ne.s32.totalorder %s88, %s90
    %p94 = scmp.eq.s32.totalorder %s12, 0
    %p95 = por %p93, %p94
    %p96 = scmp.ne.s32.totalorder %s88, %s90
    %p97 = scmp.eq.s32.totalorder %s17, 1
    %p98 = por %p96, %p97
    %p99 = scmp.ne.s32.totalorder %s90, %s91
    %p100 = scmp.eq.s32.totalorder %s17, 0
    %p101 = por %p99, %p100
    %p102 = scmp.ne.s32.totalorder %s90, %s91
    %p103 = scmp.eq.s32.totalorder %s18, 1
    %p104 = por %p102, %p103
    %p106 = scmp.ne.s32.totalorder %s91, %s105
    %p107 = scmp.eq.s32.totalorder %s18, 0
    %p108 = por %p106, %p107
    %s109 = ssub.s32 %s12, %s19
    %p110 = scmp.eq.s32.totalorder %s109, 0
    %s112 = sadd.s32 %s111, 1
    %s113 = scalar_select %p110, %s111, %s112
    %p116 = pneg %p110
    %p117 = scmp.eq.s32.totalorder %s12, 1
    %p118 = por %p116, %p117
    %p119 = scmp.ne.s32.totalorder %s111, %s114
    %p120 = scmp.eq.s32.totalorder %s12, 0
    %p121 = por %p119, %p120
    %p122 = scmp.ne.s32.totalorder %s111, %s114
    %p123 = scmp.eq.s32.totalorder %s17, 1
    %p124 = por %p122, %p123
    %p125 = scmp.ne.s32.totalorder %s114, %s115
    %p126 = scmp.eq.s32.totalorder %s17, 0
    %p127 = por %p125, %p126
    %p128 = scmp.ne.s32.totalorder %s114, %s115
    %p129 = scmp.eq.s32.totalorder %s18, 1
    %p130 = por %p128, %p129
    %p132 = scmp.ne.s32.totalorder %s115, %s131
    %p133 = scmp.eq.s32.totalorder %s18, 0
    %p134 = por %p132, %p133
    %s135 = ssub.s32 %s12, %s19
    %p136 = scmp.eq.s32.totalorder %s135, 0
    %s138 = sadd.s32 %s137, 1
    %s139 = scalar_select %p136, %s137, %s138
    %p142 = pneg %p136
    %p143 = scmp.eq.s32.totalorder %s12, 1
    %p144 = por %p142, %p143
    %p145 = scmp.ne.s32.totalorder %s137, %s140
    %p146 = scmp.eq.s32.totalorder %s12, 0
    %p147 = por %p145, %p146
    %p148 = scmp.ne.s32.totalorder %s137, %s140
    %p149 = scmp.eq.s32.totalorder %s17, 1
    %p150 = por %p148, %p149
    %p151 = scmp.ne.s32.totalorder %s140, %s141
    %p152 = scmp.eq.s32.totalorder %s17, 0
    %p153 = por %p151, %p152
    %p154 = scmp.ne.s32.totalorder %s140, %s141
    %p155 = scmp.eq.s32.totalorder %s18, 1
    %p156 = por %p154, %p155
    %p158 = scmp.ne.s32.totalorder %s141, %s157
    %p159 = scmp.eq.s32.totalorder %s18, 0
    %p160 = por %p158, %p159
    %p161 = scmp.le.s32.totalorder 1, %s12
    %p162 = scmp.lt.s32.totalorder %s12, 3
    %p163 = pnand %p161, %p162
    %p164 = pneg %p163
    // Predicated region
    $region9: #{unet_conv2_forward.3} parent=5 // pred_check
      _
    $region10: #{unet_conv2_forward.3} parent=5 // pred_check_branch
      %166 = sbr.rel (%p163) target = $region12
    $region11: #{unet_conv2_forward.3} parent=5 // pred_region
      %s167 = ssub.s32 %s12, 1
      // Predicated region
      $region13: #{unet_conv2_forward.3} parent=11 // pred_check
        %p168 = pneg %p59
      $region14: #{unet_conv2_forward.3} parent=11 // pred_check_branch
        %170 = sbr.rel (%p168) target = $region16
      $region15: #{unet_conv2_forward.3} parent=11 // pred_region
        _
      $region16: #{unet_conv2_forward.3} parent=11 // pred_fallthru
        _
      // Predicated region
      $region17: #{unet_conv2_forward.3} parent=11 // pred_check
        %p171 = pneg %p80
      $region18: #{unet_conv2_forward.3} parent=11 // pred_check_branch
        %173 = sbr.rel (%p171) target = $region20
      $region19: #{unet_conv2_forward.3} parent=11 // pred_region
        _
      $region20: #{unet_conv2_forward.3} parent=11 // pred_fallthru
        _
      // Predicated region
      $region21: #{unet_conv2_forward.3} parent=11 // pred_check
        %p174 = pneg %p101
      $region22: #{unet_conv2_forward.3} parent=11 // pred_check_branch
        %176 = sbr.rel (%p174) target = $region24
      $region23: #{unet_conv2_forward.3} parent=11 // pred_region
        _
      $region24: #{unet_conv2_forward.3} parent=11 // pred_fallthru
        _
    $region12: #{unet_conv2_forward.3} parent=5 // pred_fallthru
      _
    %p177 = scmp.lt.s32.totalorder %s12, 2
    // Predicated region
    $region25: #{unet_conv2_forward.3} parent=5 // pred_check
      %p178 = pneg %p177
    $region26: #{unet_conv2_forward.3} parent=5 // pred_check_branch
      %180 = sbr.rel (%p178) target = $region28
    $region27: #{unet_conv2_forward.3} parent=5 // pred_region
      // Predicated region
      $region29: #{unet_conv2_forward.3} parent=27 // pred_check
        %p181 = pneg %p32
      $region30: #{unet_conv2_forward.3} parent=27 // pred_check_branch
        %183 = sbr.rel (%p181) target = $region32
      $region31: #{unet_conv2_forward.3} parent=27 // pred_region
        %s184 = smul.u32 2, %s12
        %p185 = scmp.lt.s32.totalorder %s184, 3
        %s186 = scalar_select %p185, %s184, 3
        %s187 = smul.addr %s186, 8
        %s188 = scalar_lea.vmem %s0, %s187
        %s189 = smul.u32 2, %s12
      $region32: #{unet_conv2_forward.3} parent=27 // pred_fallthru
        _
    $region28: #{unet_conv2_forward.3} parent=5 // pred_fallthru
      _
    %p190 = scmp.le.s32.totalorder 1, %s12
    %p191 = scmp.lt.s32.totalorder %s12, 3
    %p192 = pnand %p190, %p191
    %p193 = pneg %p192
    // Predicated region
    $region33: #{unet_conv2_forward.3} parent=5 // pred_check
      _
    $region34: #{unet_conv2_forward.3} parent=5 // pred_check_branch
      %195 = sbr.rel (%p192) target = $region36
    $region35: #{unet_conv2_forward.3} parent=5 // pred_region
      %s196 = ssub.s32 %s12, 1
      %s197 = smul.u32 2, %s17
      %p198 = scmp.lt.s32.totalorder %s197, 3
      %s199 = scalar_select %p198, %s197, 3
      %s200 = smul.addr %s199, 8
      %s201 = scalar_lea.vmem %s0, %s200
      %p202 = pneg %p38
      %p203 = pneg %p35
      %p204 = pneg %p59
      %p205 = pneg %p56
      %p206 = pneg %p80
      %p207 = pneg %p77
      %p208 = pneg %p101
      %p209 = pneg %p98
      %p210 = pneg %p127
      %p211 = pneg %p124
      %s212 = smul.u32 2, %s17
      %p213 = scmp.lt.s32.totalorder %s212, 3
      %s214 = scalar_select %p213, %s212, 3
      %s215 = smul.addr %s214, 8
      %s216 = scalar_lea.vmem %s4, %s215
      %p217 = pneg %p153
      %p218 = pneg %p150
      %p219 = scmp.lt.s32.totalorder %s17, 1
      %s220 = scalar_select %p219, %s17, 1
      %s221 = smul.addr %s220, 2
      %s222 = scalar_lea.vmem %s5, %s221
      %s223 = smul.u32 2, %s17
      %p224 = scmp.lt.s32.totalorder %s223, 3
      %s225 = scalar_select %p224, %s223, 3
      %s226 = smul.addr %s225, 8
      %s227 = scalar_lea.vmem %s0, %s226
      %s228 = smul.u32 2, %s17
      %s229 = smul.u32 2, %s17
      %p230 = scmp.lt.s32.totalorder %s229, 3
      %s231 = scalar_select %p230, %s229, 3
      %s232 = smul.addr %s231, 8
      %s233 = scalar_lea.vmem %s4, %s232
      %s234 = smul.u32 2, %s17
      %p235 = scmp.lt.s32.totalorder %s17, 1
      %s236 = scalar_select %p235, %s17, 1
      %s237 = smul.addr %s236, 2
      %s238 = scalar_lea.vmem %s5, %s237
      %v239 = vld [vmem:[%s227] sm:$0xff]
      %v240 = vld [vmem:[%s227 + $0x8] sm:$0xff]
      %v241 = vld [vmem:[%s2] sm:$0x1]
      %v243 = vperm.slane %v241, 0
      %v245 = vmul.f32 %v239, %v243
      %v246 = vmul.f32 %v240, %v243
      %v247 = vld [vmem:[%s3] sm:$0x1]
      %v249 = vperm.slane %v247, 0
      %v251 = vadd.f32 %v245, %v249
      %v252 = vadd.f32 %v246, %v249
      %v253 = vmax.f32 %v251, 0.0
      %v254 = vmax.f32 %v252, 0.0
      %255 = vst [vmem:[#allocation2] sm:$0x1] 0.0
      %vm258 = vcmask 1040384
      %v259 = vrot.slane %v253, 7
      %v260 = vrot.slane %v254, 7
      %v261 = vsel %vm258, %v259, %v260
      %264 = vst [vmem:[#allocation2] sm:$0xfe] %v259
      %265 = vst [vmem:[#allocation2 + $0x18] sm:$0xff] %v261
      %266 = vst [vmem:[#allocation2 + $0x8] sm:$0xff] %v253
      %267 = vst [vmem:[#allocation2 + $0x20] sm:$0xff] %v254
      %268 = vst [vmem:[#allocation2 + $0x2f] sm:$0x1] 0.0
      %vm269 = vcmask 1046528
      %v270 = vrot.slane %v253, 1
      %v271 = vrot.slane %v254, 1
      %v272 = vsel %vm269, %v270, %v271
      %275 = vst [vmem:[#allocation2 + $0x10] sm:$0xff] %v272
      %276 = vst [vmem:[#allocation2 + $0x28] sm:$0x7f] %v271
      %v277 = vld [vmem:[#allocation2] sm:$0xff]
      %v278 = vld [vmem:[#allocation2 + $0x8] sm:$0xff]
      %v279 = vld [vmem:[#allocation2 + $0x10] sm:$0xff]
      %v280 = vld [vmem:[#allocation2 + $0x18] sm:$0xff]
      %v281 = vld [vmem:[#allocation2 + $0x20] sm:$0xff]
      %v282 = vld [vmem:[#allocation2 + $0x28] sm:$0xff]
      %v283 = vpack.c.bf16 %v280, %v277
      %v284 = vpack.c.bf16 %v281, %v278
      %v285 = vpack.c.bf16 %v282, %v279
      %v286 = vld [vmem:[%s1] sm:$0xf]
      %v287 = vld [vmem:[%s1 + $0x4] sm:$0xf]
      %v288 = vld [vmem:[%s1 + $0x8] sm:$0xf]
      %v289 = vld [vmem:[%s1 + $0xc] sm:$0xf]
      %v290 = vld [vmem:[%s1 + $0x10] sm:$0xf]
      %v291 = vld [vmem:[%s1 + $0x14] sm:$0xf]
      %v292 = vld [vmem:[%s1 + $0x18] sm:$0xf]
      %v293 = vld [vmem:[%s1 + $0x1c] sm:$0xf]
      %v294 = vld [vmem:[%s1 + $0x20] sm:$0xf]
      %v295 = vld [vmem:[%s1 + $0x24] sm:$0xf]
      %v296 = vld [vmem:[%s1 + $0x28] sm:$0xf]
      %v297 = vld [vmem:[%s1 + $0x2c] sm:$0xf]
      %v298 = vld [vmem:[%s1 + $0x30] sm:$0xf]
      %v299 = vld [vmem:[%s1 + $0x34] sm:$0xf]
      %v300 = vld [vmem:[%s1 + $0x38] sm:$0xf]
      %v301 = vld [vmem:[%s1 + $0x3c] sm:$0xf]
      %v302 = vld [vmem:[%s1 + $0x40] sm:$0xf]
      %v303 = vld [vmem:[%s1 + $0x44] sm:$0xf]
      %v304 = vld [vmem:[%s1 + $0x48] sm:$0xf]
      %v305 = vld [vmem:[%s1 + $0x4c] sm:$0xf]
      %v306 = vld [vmem:[%s1 + $0x50] sm:$0xf]
      %v307 = vld [vmem:[%s1 + $0x54] sm:$0xf]
      %v308 = vld [vmem:[%s1 + $0x58] sm:$0xf]
      %v309 = vld [vmem:[%s1 + $0x5c] sm:$0xf]
      %v310 = vld [vmem:[%s1 + $0x60] sm:$0xf]
      %v311 = vld [vmem:[%s1 + $0x64] sm:$0xf]
      %v312 = vld [vmem:[%s1 + $0x68] sm:$0xf]
      %v313 = vld [vmem:[%s1 + $0x6c] sm:$0xf]
      %v314 = vld [vmem:[%s1 + $0x70] sm:$0xf]
      %v315 = vld [vmem:[%s1 + $0x74] sm:$0xf]
      %v316 = vld [vmem:[%s1 + $0x78] sm:$0xf]
      %v317 = vld [vmem:[%s1 + $0x7c] sm:$0xf]
      %v318 = vld [vmem:[%s1 + $0x80] sm:$0xf]
      %v319 = vld [vmem:[%s1 + $0x84] sm:$0xf]
      %v320 = vld [vmem:[%s1 + $0x88] sm:$0xf]
      %v321 = vld [vmem:[%s1 + $0x8c] sm:$0xf]
      %v322 = vld [vmem:[%s1 + $0x90] sm:$0xf]
      %v323 = vld [vmem:[%s1 + $0x94] sm:$0xf]
      %v324 = vld [vmem:[%s1 + $0x98] sm:$0xf]
      %v325 = vld [vmem:[%s1 + $0x9c] sm:$0xf]
      %v326 = vld [vmem:[%s1 + $0xa0] sm:$0xf]
      %v327 = vld [vmem:[%s1 + $0xa4] sm:$0xf]
      %v328 = vld [vmem:[%s1 + $0xa8] sm:$0xf]
      %v329 = vld [vmem:[%s1 + $0xac] sm:$0xf]
      %v330 = vld [vmem:[%s1 + $0xb0] sm:$0xf]
      %v331 = vld [vmem:[%s1 + $0xb4] sm:$0xf]
      %v332 = vld [vmem:[%s1 + $0xb8] sm:$0xf]
      %v333 = vld [vmem:[%s1 + $0xbc] sm:$0xf]
      %v382 = vunpack.c.l.b16 %v286
      %v383 = vunpack.c.l.b16 %v287
      %v384 = vunpack.c.l.b16 %v288
      %v385 = vunpack.c.l.b16 %v289
      %v386 = vunpack.c.l.b16 %v290
      %v387 = vunpack.c.l.b16 %v291
      %v388 = vunpack.c.l.b16 %v292
      %v389 = vunpack.c.l.b16 %v293
      %v390 = vunpack.c.l.b16 %v294
      %v391 = vunpack.c.l.b16 %v295
      %v392 = vunpack.c.l.b16 %v296
      %v393 = vunpack.c.l.b16 %v297
      %v394 = vunpack.c.l.b16 %v298
      %v395 = vunpack.c.l.b16 %v299
      %v396 = vunpack.c.l.b16 %v300
      %v397 = vunpack.c.l.b16 %v301
      %v398 = vunpack.c.l.b16 %v302
      %v399 = vunpack.c.l.b16 %v303
      %v400 = vunpack.c.l.b16 %v304
      %v401 = vunpack.c.l.b16 %v305
      %v402 = vunpack.c.l.b16 %v306
      %v403 = vunpack.c.l.b16 %v307
      %v404 = vunpack.c.l.b16 %v308
      %v405 = vunpack.c.l.b16 %v309
      %v406 = vunpack.c.l.b16 %v310
      %v407 = vunpack.c.l.b16 %v311
      %v408 = vunpack.c.l.b16 %v312
      %v409 = vunpack.c.l.b16 %v313
      %v410 = vunpack.c.l.b16 %v314
      %v411 = vunpack.c.l.b16 %v315
      %v412 = vunpack.c.l.b16 %v316
      %v413 = vunpack.c.l.b16 %v317
      %v414 = vunpack.c.l.b16 %v318
      %v415 = vunpack.c.l.b16 %v319
      %v416 = vunpack.c.l.b16 %v320
      %v417 = vunpack.c.l.b16 %v321
      %v418 = vunpack.c.l.b16 %v322
      %v419 = vunpack.c.l.b16 %v323
      %v420 = vunpack.c.l.b16 %v324
      %v421 = vunpack.c.l.b16 %v325
      %v422 = vunpack.c.l.b16 %v326
      %v423 = vunpack.c.l.b16 %v327
      %v424 = vunpack.c.l.b16 %v328
      %v425 = vunpack.c.l.b16 %v329
      %v426 = vunpack.c.l.b16 %v330
      %v427 = vunpack.c.l.b16 %v331
      %v428 = vunpack.c.l.b16 %v332
      %v429 = vunpack.c.l.b16 %v333
      %v430 = vpack.c.b16 %v383, %v382
      %v431 = vpack.c.b16 %v385, %v384
      %v432 = vpack.c.b16 %v387, %v386
      %v433 = vpack.c.b16 %v389, %v388
      %v434 = vpack.c.b16 %v391, %v390
      %v435 = vpack.c.b16 %v393, %v392
      %v436 = vpack.c.b16 %v395, %v394
      %v437 = vpack.c.b16 %v397, %v396
      %v438 = vpack.c.b16 %v399, %v398
      %v439 = vpack.c.b16 %v401, %v400
      %v440 = vpack.c.b16 %v403, %v402
      %v441 = vpack.c.b16 %v405, %v404
      %v442 = vpack.c.b16 %v407, %v406
      %v443 = vpack.c.b16 %v409, %v408
      %v444 = vpack.c.b16 %v411, %v410
      %v445 = vpack.c.b16 %v413, %v412
      %v446 = vpack.c.b16 %v415, %v414
      %v447 = vpack.c.b16 %v417, %v416
      %v448 = vpack.c.b16 %v419, %v418
      %v449 = vpack.c.b16 %v421, %v420
      %v450 = vpack.c.b16 %v423, %v422
      %v451 = vpack.c.b16 %v425, %v424
      %v452 = vpack.c.b16 %v427, %v426
      %v453 = vpack.c.b16 %v429, %v428
      %478 = vmatpush.bf16.msra.mxu0 %v437
      %479 = vmatpush.bf16.msra.mxu0 %v436
      %480 = vmatpush.bf16.msra.mxu0 %v435
      %481 = vmatpush.bf16.msra.mxu0 %v434
      %482 = vmatpush.bf16.msra.mxu0 %v433
      %483 = vmatpush.bf16.msra.mxu0 %v432
      %484 = vmatpush.bf16.msra.mxu0 %v431
      %485 = vmatpush.bf16.msra.mxu0 %v430
      %486 = vmatmul.bf16.gmra.mxu0 %v283
      %v487 = vpop.f32.mrf.mxu0
      %v488 = vadd.f32 0.0, %v487
      %v489 = vpop.f32.mrf.mxu0
      %v490 = vadd.f32 0.0, %v489
      %491 = vdwg.mxu0
      %492 = vmatpush.bf16.msra.mxu0 %v445
      %493 = vmatpush.bf16.msra.mxu0 %v444
      %494 = vmatpush.bf16.msra.mxu0 %v443
      %495 = vmatpush.bf16.msra.mxu0 %v442
      %496 = vmatpush.bf16.msra.mxu0 %v441
      %497 = vmatpush.bf16.msra.mxu0 %v440
      %498 = vmatpush.bf16.msra.mxu0 %v439
      %499 = vmatpush.bf16.msra.mxu0 %v438
      %500 = vmatmul.bf16.gmra.mxu0 %v284
      %v501 = vpop.f32.mrf.mxu0
      %v502 = vadd.f32 %v488, %v501
      %v503 = vpop.f32.mrf.mxu0
      %v504 = vadd.f32 %v490, %v503
      %505 = vdwg.mxu0
      %506 = vmatpush.bf16.msra.mxu0 %v453
      %507 = vmatpush.bf16.msra.mxu0 %v452
      %508 = vmatpush.bf16.msra.mxu0 %v451
      %509 = vmatpush.bf16.msra.mxu0 %v450
      %510 = vmatpush.bf16.msra.mxu0 %v449
      %511 = vmatpush.bf16.msra.mxu0 %v448
      %512 = vmatpush.bf16.msra.mxu0 %v447
      %513 = vmatpush.bf16.msra.mxu0 %v446
      %514 = vmatmul.bf16.gmra.mxu0 %v285
      %v515 = vpop.f32.mrf.mxu0
      %v516 = vadd.f32 %v502, %v515
      %v517 = vpop.f32.mrf.mxu0
      %v518 = vadd.f32 %v504, %v517
      %519 = vdwg.mxu0
      %520 = vst [vmem:[%s233] sm:$0xff] %v516
      %521 = vst [vmem:[%s233 + $0x8] sm:$0xff] %v518
      %v522 = vadd.f32 %v516, %v518
      %v523 = vrot.slane %v522, 4
      %v524 = vadd.f32 %v522, %v523
      %v525 = vrot.slane %v524, 2
      %v526 = vadd.f32 %v524, %v525
      %v527 = vrot.slane %v526, 1
      %v528 = vadd.f32 %v526, %v527
      %529 = vst [vmem:[%s238] sm:$0x1] %v528
      %v530 = vmul.f32 %v516, %v516
      %v531 = vmul.f32 %v518, %v518
      %v532 = vadd.f32 %v530, %v531
      %v533 = vrot.slane %v532, 4
      %v534 = vadd.f32 %v532, %v533
      %v535 = vrot.slane %v534, 2
      %v536 = vadd.f32 %v534, %v535
      %v537 = vrot.slane %v536, 1
      %v538 = vadd.f32 %v536, %v537
      %539 = vst [vmem:[%s238 + $0x1] sm:$0x1] %v538
      %s540 = smul.u32 2, %s17
      %p541 = scmp.lt.s32.totalorder %s540, 3
      %s542 = scalar_select %p541, %s540, 3
      %s543 = smul.addr %s542, 8
      %s544 = scalar_lea.vmem %s4, %s543
      %p545 = scmp.lt.s32.totalorder %s17, 1
      %s546 = scalar_select %p545, %s17, 1
      %s547 = smul.addr %s546, 2
      %s548 = scalar_lea.vmem %s5, %s547
      // Predicated region
      $region37: #{unet_conv2_forward.3} parent=35 // pred_check
        %p549 = pneg %p124
      $region38: #{unet_conv2_forward.3} parent=35 // pred_check_branch
        %551 = sbr.rel (%p549) target = $region40
      $region39: #{unet_conv2_forward.3} parent=35 // pred_region
        %s552 = smul.u32 2, %s17
      $region40: #{unet_conv2_forward.3} parent=35 // pred_fallthru
        _
      // Predicated region
      $region41: #{unet_conv2_forward.3} parent=35 // pred_check
        %p553 = pneg %p150
      $region42: #{unet_conv2_forward.3} parent=35 // pred_check_branch
        %555 = sbr.rel (%p553) target = $region44
      $region43: #{unet_conv2_forward.3} parent=35 // pred_region
        _
      $region44: #{unet_conv2_forward.3} parent=35 // pred_fallthru
        _
    $region36: #{unet_conv2_forward.3} parent=5 // pred_fallthru
      _
    %p556 = scmp.le.s32.totalorder 2, %s12
    // Predicated region
    $region45: #{unet_conv2_forward.3} parent=5 // pred_check
      %p557 = pneg %p556
    $region46: #{unet_conv2_forward.3} parent=5 // pred_check_branch
      %559 = sbr.rel (%p557) target = $region48
    $region47: #{unet_conv2_forward.3} parent=5 // pred_region
      %s560 = ssub.s32 %s12, 2
      // Predicated region
      $region49: #{unet_conv2_forward.3} parent=47 // pred_check
        %p561 = pneg %p130
      $region50: #{unet_conv2_forward.3} parent=47 // pred_check_branch
        %563 = sbr.rel (%p561) target = $region52
      $region51: #{unet_conv2_forward.3} parent=47 // pred_region
        %s564 = smul.u32 2, %s18
        %p565 = scmp.lt.s32.totalorder %s564, 3
        %s566 = scalar_select %p565, %s564, 3
        %s567 = smul.addr %s566, 8
        %s568 = scalar_lea.vmem %s4, %s567
      $region52: #{unet_conv2_forward.3} parent=47 // pred_fallthru
        _
      // Predicated region
      $region53: #{unet_conv2_forward.3} parent=47 // pred_check
        %p569 = pneg %p156
      $region54: #{unet_conv2_forward.3} parent=47 // pred_check_branch
        %571 = sbr.rel (%p569) target = $region56
      $region55: #{unet_conv2_forward.3} parent=47 // pred_region
        %p572 = scmp.lt.s32.totalorder %s18, 1
        %s573 = scalar_select %p572, %s18, 1
        %s574 = smul.addr %s573, 2
        %s575 = scalar_lea.vmem %s5, %s574
      $region56: #{unet_conv2_forward.3} parent=47 // pred_fallthru
        _
    $region48: #{unet_conv2_forward.3} parent=5 // pred_fallthru
      _
  $region6: #{unet_conv2_forward.3} parent=0 // loop_footer
    %s16 = sadd.s32 1, %s12
  $region7: #{unet_conv2_forward.3} parent=0 // loop_footer_branch
    %11 = sbr.rel target = $region3
  $region8: #{unet_conv2_forward.3} parent=0 // loop_exit
    _

</llo_original>
